<compile_context>
chip_gen: v5e
topology: v5e:2x2
jax: 0.10.0
libtpu: 0.0.40
codegen_flags: <defaults>
</compile_context>

<pallas_src>
import jax
import jax.numpy as jnp
from jax.experimental import pallas as pl
from jax.experimental.pallas import tpu as pltpu


def _round_up(n, m):
    return (n + m - 1) // m * m


def _mlp_kernel(xT_ref, w1_ref, b1_ref, w2_ref, b2_ref, w3_ref, b3_ref, o_ref):
    """One batch tile: xT (F, TB) -> y (1, TB). f32 accumulation throughout."""
    xT = xT_ref[...]                                            # (F, TB) compute dtype

    # fc1: (32, F) @ (F, TB) -> (32, TB) on the MXU, f32 accumulate.
    h1 = jnp.dot(w1_ref[...], xT, preferred_element_type=jnp.float32) + b1_ref[...]
    h1 = jnp.maximum(h1, 0.0)

    # fc2: (16, 32) @ (32, TB) -> (16, TB).
    h2 = jnp.dot(w2_ref[...], h1.astype(w2_ref.dtype),
                 preferred_element_type=jnp.float32) + b2_ref[...]
    h2 = jnp.maximum(h2, 0.0)

    # fc3: out_features == 1 -> VPU multiply + sublane (XLU) reduce, keeping the
    # result lane-dense and freeing the MXU push slot.
    y = jnp.sum(h2 * w3_ref[...], axis=0, keepdims=True) + b3_ref[...]  # (1, TB)

    o_ref[...] = y.astype(o_ref.dtype)


def tmodel_forward(x, params, *, block_b=8192, compute_dtype=jnp.bfloat16):
    """x: (B, begin_size) float32.
    params in PyTorch Linear convention:
      w1 (32, F), b1 (32,), w2 (16, 32), b2 (16,), w3 (1, 16), b3 (1,)."""
    B, F = x.shape
    H1 = params["w1"].shape[0]          # 32
    H2 = params["w2"].shape[0]          # 16

    # Batch tile: lane axis of every block must be a multiple of 128; big tiles
    # amortize the ~0.35 us per-grid-step overhead.
    TB = _round_up(min(block_b, _round_up(B, 128)), 128)
    Bp = _round_up(B, TB)
    grid = (Bp // TB,)

    # Boundary layout plumbing (XLA side): pad batch, put batch on the lane
    # axis, cast the streamed operand to bf16 (halves HBM bytes, bf16 MXU).
    xp = jnp.pad(x, ((0, Bp - B), (0, 0)))
    xT = xp.T.astype(compute_dtype)                             # (F, Bp)

    w1c = params["w1"].astype(compute_dtype)                    # (32, F)
    w2c = params["w2"].astype(compute_dtype)                    # (16, 32)
    b1c = params["b1"].reshape(H1, 1).astype(jnp.float32)       # (32, 1)
    b2c = params["b2"].reshape(H2, 1).astype(jnp.float32)       # (16, 1)
    w3c = params["w3"].reshape(1, H2).T.astype(jnp.float32)     # (16, 1) stays f32 (VPU)
    b3c = params["b3"].reshape(1, 1).astype(jnp.float32)        # (1, 1)

    resident = lambda shape: pl.BlockSpec(shape, lambda i: (0, 0))

    out = pl.pallas_call(
        _mlp_kernel,
        out_shape=jax.ShapeDtypeStruct((1, Bp), jnp.float32),
        grid=grid,
        in_specs=[
            pl.BlockSpec((F, TB), lambda i: (0, i)),            # streamed x tile
            resident(w1c.shape), resident(b1c.shape),
            resident(w2c.shape), resident(b2c.shape),
            resident(w3c.shape), resident(b3c.shape),
        ],
        out_specs=pl.BlockSpec((1, TB), lambda i: (0, i)),      # lane-dense store
        compiler_params=pltpu.CompilerParams(
            dimension_semantics=("parallel",)),                 # megacore on v7x
    )(xT, w1c, b1c, w2c, b2c, w3c, b3c)

    return out[0, :B].reshape(B, 1)


def init_params(begin_size, key):
    """Matches tmodel.__init__: weights (out, in) ~ N(0,1) via init.normal_;
    biases keep the PyTorch Linear default U(-1/sqrt(fan_in), 1/sqrt(fan_in))."""
    ks = jax.random.split(key, 6)

    def linear(kw, kb, fan_in, fan_out):
        w = jax.random.normal(kw, (fan_out, fan_in), dtype=jnp.float32)
        bound = float(fan_in) ** -0.5
        b = jax.random.uniform(kb, (fan_out,), dtype=jnp.float32,
                               minval=-bound, maxval=bound)
        return w, b

    w1, b1 = linear(ks[0], ks[1], begin_size, 32)
    w2, b2 = linear(ks[2], ks[3], 32, 16)
    w3, b3 = linear(ks[4], ks[5], 16, 1)
    return {"w1": w1, "b1": b1, "w2": w2, "b2": b2, "w3": w3, "b3": b3}


def _reference(x, p, compute_dtype=jnp.float32):
    """Pure-JAX reference applying the same boundary casts as the kernel."""
    cd = compute_dtype
    h1 = jnp.maximum(
        jnp.dot(x.astype(cd), p["w1"].T.astype(cd),
                preferred_element_type=jnp.float32) + p["b1"], 0.0)
    h2 = jnp.maximum(
        jnp.dot(h1.astype(cd), p["w2"].T.astype(cd),
                preferred_element_type=jnp.float32) + p["b2"], 0.0)
    return jnp.dot(h2, p["w3"].T.astype(jnp.float32)) + p["b3"]


if __name__ == "__main__":
    key = jax.random.PRNGKey(0)
    k_x, k_p, k_x2 = jax.random.split(key, 3)

    begin_size = 16
    params = init_params(begin_size, k_p)

    # 1) Small batch, f32 compute path: tight check against the f32 reference.
    x_small = jax.random.normal(k_x, (8, begin_size), dtype=jnp.float32)
    y_f32 = jax.block_until_ready(
        tmodel_forward(x_small, params, compute_dtype=jnp.float32))
    ref_f32 = _reference(x_small, params, jnp.float32)
    assert y_f32.shape == (8, 1)
    assert jnp.allclose(y_f32, ref_f32, atol=1e-3, rtol=1e-4)

    # 2) Larger, non-multiple batch with a small tile to exercise padding and a
    #    multi-step grid, bf16-streaming path (checked against a reference that
    #    applies the same bf16 casts; loose tol covers bf16 rounding-order ulps).
    x_big = jax.random.normal(k_x2, (300, begin_size), dtype=jnp.float32)
    y_bf16 = jax.block_until_ready(
        tmodel_forward(x_big, params, block_b=128, compute_dtype=jnp.bfloat16))
    ref_bf16 = _reference(x_big, params, jnp.bfloat16)
    assert y_bf16.shape == (300, 1)
    assert jnp.allclose(y_bf16, ref_bf16, atol=1e-1, rtol=1e-2)

    print("KERNEL_OK")
</pallas_src>

<mosaic_0001>
module attributes {stable_mosaic.version = 11 : i64} {
  func.func @_mlp_kernel(%arg0: i32, %arg1: memref<16x128xf32, #tpu.memory_space<vmem>>, %arg2: memref<32x16xf32, #tpu.memory_space<vmem>>, %arg3: memref<32x1xf32, #tpu.memory_space<vmem>>, %arg4: memref<16x32xf32, #tpu.memory_space<vmem>>, %arg5: memref<16x1xf32, #tpu.memory_space<vmem>>, %arg6: memref<16x1xf32, #tpu.memory_space<vmem>>, %arg7: memref<1x1xf32, #tpu.memory_space<vmem>>, %arg8: memref<1x128xf32, #tpu.memory_space<vmem>>) attributes {dimension_semantics = [#tpu.dimension_semantics<parallel>], iteration_bounds = array<i64: 1>, scalar_prefetch = 0 : i64, scratch_operands = 0 : i64, tpu.core_type = #tpu.core_type<tc>, window_params = [{transform_indices = @transform_0, window_bounds = array<i64: 16, 128>}, {pipeline_mode = #tpu.pipeline_mode<synchronous>, transform_indices = @transform_1, window_bounds = array<i64: 32, 16>}, {pipeline_mode = #tpu.pipeline_mode<synchronous>, transform_indices = @transform_2, window_bounds = array<i64: 32, 1>}, {pipeline_mode = #tpu.pipeline_mode<synchronous>, transform_indices = @transform_3, window_bounds = array<i64: 16, 32>}, {pipeline_mode = #tpu.pipeline_mode<synchronous>, transform_indices = @transform_4, window_bounds = array<i64: 16, 1>}, {pipeline_mode = #tpu.pipeline_mode<synchronous>, transform_indices = @transform_5, window_bounds = array<i64: 16, 1>}, {pipeline_mode = #tpu.pipeline_mode<synchronous>, transform_indices = @transform_6, window_bounds = array<i64: 1, 1>}, {transform_indices = @transform_7, window_bounds = array<i64: 1, 128>}]} {
    %c0 = arith.constant 0 : index
    %c0_0 = arith.constant 0 : index
    %0 = vector.load %arg1[%c0, %c0_0] : memref<16x128xf32, #tpu.memory_space<vmem>>, vector<16x128xf32>
    %c0_1 = arith.constant 0 : index
    %c0_2 = arith.constant 0 : index
    %1 = vector.load %arg2[%c0_1, %c0_2] : memref<32x16xf32, #tpu.memory_space<vmem>>, vector<32x16xf32>
    %cst = arith.constant dense<0.000000e+00> : vector<32x128xf32>
    %2 = tpu.matmul %1, %0, %cst {dimension_numbers = #tpu.dot_dimension_numbers<[1], [0], [0], [1], [0, 0, 1, 1], [], []>} : vector<32x16xf32>, vector<16x128xf32>, vector<32x128xf32> -> vector<32x128xf32>
    %c0_3 = arith.constant 0 : index
    %c0_4 = arith.constant 0 : index
    %3 = vector.load %arg3[%c0_3, %c0_4] : memref<32x1xf32, #tpu.memory_space<vmem>>, vector<32x1xf32>
    %4 = vector.broadcast %3 : vector<32x1xf32> to vector<32x128xf32>
    %5 = arith.addf %2, %4 : vector<32x128xf32>
    %cst_5 = arith.constant 0.000000e+00 : f32
    %6 = vector.broadcast %cst_5 : f32 to vector<32x128xf32>
    %7 = arith.maximumf %5, %6 : vector<32x128xf32>
    %c0_6 = arith.constant 0 : index
    %c0_7 = arith.constant 0 : index
    %8 = vector.load %arg4[%c0_6, %c0_7] : memref<16x32xf32, #tpu.memory_space<vmem>>, vector<16x32xf32>
    %cst_8 = arith.constant dense<0.000000e+00> : vector<16x128xf32>
    %9 = tpu.matmul %8, %7, %cst_8 {dimension_numbers = #tpu.dot_dimension_numbers<[1], [0], [0], [1], [0, 0, 1, 1], [], []>} : vector<16x32xf32>, vector<32x128xf32>, vector<16x128xf32> -> vector<16x128xf32>
    %c0_9 = arith.constant 0 : index
    %c0_10 = arith.constant 0 : index
    %10 = vector.load %arg5[%c0_9, %c0_10] : memref<16x1xf32, #tpu.memory_space<vmem>>, vector<16x1xf32>
    %11 = vector.broadcast %10 : vector<16x1xf32> to vector<16x128xf32>
    %12 = arith.addf %9, %11 : vector<16x128xf32>
    %cst_11 = arith.constant 0.000000e+00 : f32
    %13 = vector.broadcast %cst_11 : f32 to vector<16x128xf32>
    %14 = arith.maximumf %12, %13 : vector<16x128xf32>
    %c0_12 = arith.constant 0 : index
    %c0_13 = arith.constant 0 : index
    %15 = vector.load %arg6[%c0_12, %c0_13] : memref<16x1xf32, #tpu.memory_space<vmem>>, vector<16x1xf32>
    %16 = vector.broadcast %15 : vector<16x1xf32> to vector<16x128xf32>
    %17 = arith.mulf %14, %16 : vector<16x128xf32>
    %cst_14 = arith.constant dense<0.000000e+00> : vector<128xf32>
    %18 = vector.multi_reduction <add>, %17, %cst_14 [0] : vector<16x128xf32> to vector<128xf32>
    %19 = vector.shape_cast %18 : vector<128xf32> to vector<1x128xf32>
    %c0_15 = arith.constant 0 : index
    %c0_16 = arith.constant 0 : index
    %20 = vector.load %arg7[%c0_15, %c0_16] : memref<1x1xf32, #tpu.memory_space<vmem>>, vector<1x1xf32>
    %21 = vector.broadcast %20 : vector<1x1xf32> to vector<1x128xf32>
    %22 = arith.addf %19, %21 : vector<1x128xf32>
    %c0_17 = arith.constant 0 : index
    %c0_18 = arith.constant 0 : index
    %23 = vector.load %arg8[%c0_17, %c0_18] : memref<1x128xf32, #tpu.memory_space<vmem>>, vector<1x128xf32>
    tpu.vector_store %arg8[%c0_17, %c0_18], %22 {strides = array<i32>} : memref<1x128xf32, #tpu.memory_space<vmem>>, vector<1x128xf32>,
    return
  }
  func.func @transform_0(%arg0: i32) -> (i32, i32) {
    %c0_i32 = arith.constant 0 : i32
    %c0_i32_0 = arith.constant 0 : i32
    return %c0_i32, %arg0 : i32, i32
  }
  func.func @transform_1(%arg0: i32) -> (i32, i32) {
    %c0_i32 = arith.constant 0 : i32
    %c0_i32_0 = arith.constant 0 : i32
    %c0_i32_1 = arith.constant 0 : i32
    return %c0_i32, %c0_i32_0 : i32, i32
  }
  func.func @transform_2(%arg0: i32) -> (i32, i32) {
    %c0_i32 = arith.constant 0 : i32
    %c0_i32_0 = arith.constant 0 : i32
    %c0_i32_1 = arith.constant 0 : i32
    return %c0_i32, %c0_i32_0 : i32, i32
  }
  func.func @transform_3(%arg0: i32) -> (i32, i32) {
    %c0_i32 = arith.constant 0 : i32
    %c0_i32_0 = arith.constant 0 : i32
    %c0_i32_1 = arith.constant 0 : i32
    return %c0_i32, %c0_i32_0 : i32, i32
  }
  func.func @transform_4(%arg0: i32) -> (i32, i32) {
    %c0_i32 = arith.constant 0 : i32
    %c0_i32_0 = arith.constant 0 : i32
    %c0_i32_1 = arith.constant 0 : i32
    return %c0_i32, %c0_i32_0 : i32, i32
  }
  func.func @transform_5(%arg0: i32) -> (i32, i32) {
    %c0_i32 = arith.constant 0 : i32
    %c0_i32_0 = arith.constant 0 : i32
    %c0_i32_1 = arith.constant 0 : i32
    return %c0_i32, %c0_i32_0 : i32, i32
  }
  func.func @transform_6(%arg0: i32) -> (i32, i32) {
    %c0_i32 = arith.constant 0 : i32
    %c0_i32_0 = arith.constant 0 : i32
    %c0_i32_1 = arith.constant 0 : i32
    return %c0_i32, %c0_i32_0 : i32, i32
  }
  func.func @transform_7(%arg0: i32) -> (i32, i32) {
    %c0_i32 = arith.constant 0 : i32
    %c0_i32_0 = arith.constant 0 : i32
    return %c0_i32, %arg0 : i32, i32
  }
}

</mosaic_0001>

<llo_original>
// kernel: tpu_custom_call.1
$region0: #{tpu_custom_call.1}
  #allocation0 [shape = 'u32[]', space=smem, size = 0x4, offset = 0x4, fixed_abs, tag = 'smem constant byte address 0x4 - core index']
  #allocation1 [shape = 'u32[72,128]{1,0:T(1,128)}', space=vmem, size = 0x9000, scoped, tag = 'internal scratch']
  #allocation2 [shape = 'f32[1,1]{1,0:T(1,128)S(1)}', space=vmem, size = 0x200, scoped, tag = 'scoped memory for tpu_custom_call.1']
  %s0 = inlined_call_operand.vmem [shape: f32[16,128], index: 0, kind: input, shape index: {}]
  %s1 = inlined_call_operand.vmem [shape: f32[32,16], index: 1, kind: input, shape index: {}]
  %s2 = inlined_call_operand.vmem [shape: f32[32,1], index: 2, kind: input, shape index: {}]
  %s3 = inlined_call_operand.vmem [shape: f32[16,32], index: 3, kind: input, shape index: {}]
  %s4 = inlined_call_operand.vmem [shape: f32[16,1], index: 4, kind: input, shape index: {}]
  %s5 = inlined_call_operand.vmem [shape: f32[16,1], index: 5, kind: input, shape index: {}]
  %s6 = inlined_call_operand.<no memory space> [shape: f32[1,1], index: 6, kind: input, shape index: {}]
  %s7 = inlined_call_operand.hbm [shape: f32[1,128], index: 7, kind: output, shape index: {}]
  %s8 = sld [smem:[#allocation0]]
  $region38: #{tpu_custom_call.1} parent=0
    _
  %s10 = ssub.s32 1, %s8
  %s11 = scalar_select 0, %s10, %s8
  %v12 = vstv %s6
  %13 = vst [vmem:[#allocation2] sm:$0x1] %v12
  $region1: #{tpu_custom_call.1} parent=0
    #allocation3 [shape = 'u8[512]{0}', space=vmem, size = 0x400, scoped, tag = 'output window, operand 0, single buffered']
    #allocation4 [shape = 's32[1]{0}', space=sflag, size = 0x4, scoped, tag = 'scoped memory for tpu_custom_call.1']
    %14 = vsyncpa [#allocation4], 0
    // Predicated region
    $region2: #{tpu_custom_call.1} parent=1 // pred_check
      _
    $region3: #{tpu_custom_call.1} parent=1 // pred_check_branch
      %16 = sbr.rel (0) target = $region5
    $region4: #{tpu_custom_call.1} parent=1 // pred_region
      _
    $region5: #{tpu_custom_call.1} parent=1 // pred_fallthru
      _
    // Predicated region
    $region6: #{tpu_custom_call.1} parent=1 // pred_check
      _
    $region7: #{tpu_custom_call.1} parent=1 // pred_check_branch
      %18 = sbr.rel (0) target = $region9
    $region8: #{tpu_custom_call.1} parent=1 // pred_region
      _
    $region9: #{tpu_custom_call.1} parent=1 // pred_fallthru
      _
    // Predicated region
    $region10: #{tpu_custom_call.1} parent=1 // pred_check
      _
    $region11: #{tpu_custom_call.1} parent=1 // pred_check_branch
      %20 = sbr.rel (0) target = $region13
    $region12: #{tpu_custom_call.1} parent=1 // pred_region
      _
    $region13: #{tpu_custom_call.1} parent=1 // pred_fallthru
      _
    // Predicated region
    $region14: #{tpu_custom_call.1} parent=1 // pred_check
      _
    $region15: #{tpu_custom_call.1} parent=1 // pred_check_branch
      %22 = sbr.rel (0) target = $region17
    $region16: #{tpu_custom_call.1} parent=1 // pred_region
      _
    $region17: #{tpu_custom_call.1} parent=1 // pred_fallthru
      _
    // Predicated region
    $region18: #{tpu_custom_call.1} parent=1 // pred_check
      _
    $region19: #{tpu_custom_call.1} parent=1 // pred_check_branch
      %24 = sbr.rel (0) target = $region21
    $region20: #{tpu_custom_call.1} parent=1 // pred_region
      _
    $region21: #{tpu_custom_call.1} parent=1 // pred_fallthru
      _
    // Predicated region
    $region22: #{tpu_custom_call.1} parent=1 // pred_check
      _
    $region23: #{tpu_custom_call.1} parent=1 // pred_check_branch
      %26 = sbr.rel (0) target = $region25
    $region24: #{tpu_custom_call.1} parent=1 // pred_region
      _
    $region25: #{tpu_custom_call.1} parent=1 // pred_fallthru
      _
    // Predicated region
    $region26: #{tpu_custom_call.1} parent=1 // pred_check
      _
    $region27: #{tpu_custom_call.1} parent=1 // pred_check_branch
      %28 = sbr.rel (0) target = $region29
    $region28: #{tpu_custom_call.1} parent=1 // pred_region
      _
    $region29: #{tpu_custom_call.1} parent=1 // pred_fallthru
      _
    %v29 = vld [vmem:[%s0] sm:$0xff]
    %v30 = vld [vmem:[%s0 + $0x8] sm:$0xff]
    %v31 = vld [vmem:[%s1] sm:$0xff]
    %v32 = vld [vmem:[%s1 + $0x8] sm:$0xff]
    %v33 = vld [vmem:[%s1 + $0x10] sm:$0xff]
    %v34 = vld [vmem:[%s1 + $0x18] sm:$0xff]
    %v35 = vld [vmem:[%s2] sm:$0xff]
    %v36 = vld [vmem:[%s2 + $0x8] sm:$0xff]
    %v37 = vld [vmem:[%s2 + $0x10] sm:$0xff]
    %v38 = vld [vmem:[%s2 + $0x18] sm:$0xff]
    %40 = vset.pattern.permute.xlu0 0
    %41 = vperm.xlu0 %40, %v35
    %v42 = vpop.permute.xlu0 %41
    %45 = vset.pattern.permute.xlu0 0
    %46 = vperm.xlu0 %45, %v36
    %v47 = vpop.permute.xlu0 %46
    %50 = vset.pattern.permute.xlu0 0
    %51 = vperm.xlu0 %50, %v37
    %v52 = vpop.permute.xlu0 %51
    %55 = vset.pattern.permute.xlu0 0
    %56 = vperm.xlu0 %55, %v38
    %v57 = vpop.permute.xlu0 %56
    %vm59 = vcmask 130048
    %v61 = vsel %vm59, %v31, 0
    %v64 = vsel %vm59, %v32, 0
    %v67 = vsel %vm59, %v33, 0
    %v70 = vsel %vm59, %v34, 0
    %72 = vmatpush.msra.mxu0 0.0
    %73 = vmatpush.msra.mxu0 0.0
    %74 = vmatpush.msra.mxu0 0.0
    %75 = vmatpush.msra.mxu0 0.0
    %76 = vmatpush.msra.mxu0 0.0
    %77 = vmatpush.msra.mxu0 0.0
    %78 = vmatpush.msra.mxu0 0.0
    %79 = vmatpush.msra.mxu0 0.0
    %80 = vmatpush.msra.mxu0 0.0
    %81 = vmatpush.msra.mxu0 0.0
    %82 = vmatpush.msra.mxu0 0.0
    %83 = vmatpush.msra.mxu0 0.0
    %84 = vmatpush.msra.mxu0 0.0
    %85 = vmatpush.msra.mxu0 0.0
    %86 = vmatpush.msra.mxu0 %v30
    %87 = vmatpush.msra.mxu0 %v29
    %88 = vmatmul.f32.gmra.mxu0 %v61
    %v89 = vpop.f32.mrf.mxu0
    %v90 = vadd.f32 %v42, %v89
    %91 = vmatmul.f32.gmra.mxu0 %v64
    %v92 = vpop.f32.mrf.mxu0
    %v93 = vadd.f32 %v47, %v92
    %94 = vmatmul.f32.gmra.mxu0 %v67
    %v95 = vpop.f32.mrf.mxu0
    %v96 = vadd.f32 %v52, %v95
    %97 = vmatmul.f32.gmra.mxu0 %v70
    %v98 = vpop.f32.mrf.mxu0
    %v99 = vadd.f32 %v57, %v98
    %100 = vdwg.mxu0
    %v101 = vmax.f32 %v90, 0.0
    %v102 = vmax.f32 %v93, 0.0
    %v103 = vmax.f32 %v96, 0.0
    %v104 = vmax.f32 %v99, 0.0
    %v105 = vld [vmem:[%s3] sm:$0xff]
    %v106 = vld [vmem:[%s3 + $0x8] sm:$0xff]
    %v107 = vld [vmem:[%s4] sm:$0xff]
    %v108 = vld [vmem:[%s4 + $0x8] sm:$0xff]
    %110 = vset.pattern.permute.xlu0 0
    %111 = vperm.xlu0 %110, %v107
    %v112 = vpop.permute.xlu0 %111
    %115 = vset.pattern.permute.xlu0 0
    %116 = vperm.xlu0 %115, %v108
    %v117 = vpop.permute.xlu0 %116
    %vm119 = vcmask 261120
    %v121 = vsel %vm119, %v105, 0
    %v124 = vsel %vm119, %v106, 0
    %126 = vmatpush.msra.mxu0 0.0
    %127 = vmatpush.msra.mxu0 0.0
    %128 = vmatpush.msra.mxu0 0.0
    %129 = vmatpush.msra.mxu0 0.0
    %130 = vmatpush.msra.mxu0 0.0
    %131 = vmatpush.msra.mxu0 0.0
    %132 = vmatpush.msra.mxu0 0.0
    %133 = vmatpush.msra.mxu0 0.0
    %134 = vmatpush.msra.mxu0 0.0
    %135 = vmatpush.msra.mxu0 0.0
    %136 = vmatpush.msra.mxu0 0.0
    %137 = vmatpush.msra.mxu0 0.0
    %138 = vmatpush.msra.mxu0 %v104
    %139 = vmatpush.msra.mxu0 %v103
    %140 = vmatpush.msra.mxu0 %v102
    %141 = vmatpush.msra.mxu0 %v101
    %142 = vmatmul.f32.gmra.mxu0 %v121
    %v143 = vpop.f32.mrf.mxu0
    %v144 = vadd.f32 %v112, %v143
    %145 = vmatmul.f32.gmra.mxu0 %v124
    %v146 = vpop.f32.mrf.mxu0
    %v147 = vadd.f32 %v117, %v146
    %148 = vdwg.mxu0
    %v149 = vmax.f32 %v144, 0.0
    %v150 = vmax.f32 %v147, 0.0
    %v151 = vld [vmem:[%s5] sm:$0xff]
    %v152 = vld [vmem:[%s5 + $0x8] sm:$0xff]
    %154 = vset.pattern.permute.xlu0 0
    %155 = vperm.xlu0 %154, %v151
    %v156 = vpop.permute.xlu0 %155
    %159 = vset.pattern.permute.xlu0 0
    %160 = vperm.xlu0 %159, %v152
    %v161 = vpop.permute.xlu0 %160
    %v163 = vmul.f32 %v149, %v156
    %v164 = vmul.f32 %v150, %v161
    %v165 = vadd.f32 %v163, %v164
    %v166 = vrot.slane %v165, 4
    %v167 = vadd.f32 %v165, %v166
    %v168 = vrot.slane %v167, 2
    %v169 = vadd.f32 %v167, %v168
    %v170 = vrot.slane %v169, 1
    %v171 = vadd.f32 %v169, %v170
    %v172 = vld [vmem:[#allocation2] sm:$0x1]
    %174 = vset.pattern.permute.xlu0 0
    %175 = vperm.xlu0 %174, %v172
    %v176 = vpop.permute.xlu0 %175
    %v178 = vperm.slane %v176, 0
    %v179 = vadd.f32 %v171, %v178
    %180 = vst [vmem:[#allocation3] sm:$0x1] %v179
    // Predicated region
    $region30: #{tpu_custom_call.1} parent=1 // pred_check
      _
    $region31: #{tpu_custom_call.1} parent=1 // pred_check_branch
      %182 = sbr.rel (0) target = $region33
    $region32: #{tpu_custom_call.1} parent=1 // pred_region
      %184 = vsyncadd [#allocation4], 0
      %s186 = sshll.u32 [#allocation3], 4
      %s187 = int_to_ptr.vmem [resolvable:$true] %s186
      %s188 = sshll.u32 %s7, 4
      %s189 = int_to_ptr.hbm [resolvable:$true] %s188
      %191 = dma.vmem_to_hbm [thread:$0]  %s187, 16, %s189, [#allocation4]
    $region33: #{tpu_custom_call.1} parent=1 // pred_fallthru
      _
    // Predicated region
    $region34: #{tpu_custom_call.1} parent=1 // pred_check
      _
    $region35: #{tpu_custom_call.1} parent=1 // pred_check_branch
      %193 = sbr.rel (0) target = $region37
    $region36: #{tpu_custom_call.1} parent=1 // pred_region
      %195 = dma.done [#allocation4], 16
    $region37: #{tpu_custom_call.1} parent=1 // pred_fallthru
      _
    %196 = vsyncpa [#allocation4], 1

</llo_original>
